<compile_context>
chip_gen: v7x
topology: tpu7x:2x2x1
jax: 0.10.0
libtpu: 0.0.40
codegen_flags: <defaults>
</compile_context>

<pallas_src>
import jax
import jax.numpy as jnp
from jax.experimental import pallas as pl
from jax.experimental.pallas import tpu as pltpu


def _round_up(x, m):
    return (x + m - 1) // m * m


def _choose_tile_b(padded_b, k_elems, itemsize=4):
    """Pick the batch tile:
       - a multiple of 8 that divides padded_b (no wrapper pad beyond the
         sublane pad),
       - capped so one x tile is <= ~8 MiB (double-buffered fits every
         generation's scoped VMEM, incl. v7x),
       - >= 2 grid steps whenever padded_b >= 16 (v7x megacore)."""
    if padded_b <= 8:
        return padded_b
    vmem_rows = max(8, ((8 << 20) // max(1, k_elems * itemsize)) // 8 * 8)
    cap = max(8, min(512, vmem_rows, padded_b // 2))
    best = 8
    for d in range(8, cap + 1, 8):
        if padded_b % d == 0:
            best = d
    return best


# ----------------------------------------------------------------------------
# Fused kernel: in-kernel global average pool (over HW) + one K=C MXU matmul.
#   x:[tile_b, C, HW]  w:[C, Npad]  b:[1, Npad]  ->  out:[tile_b, Npad]
# ----------------------------------------------------------------------------
def _gap_linear_kernel(x_ref, w_ref, b_ref, out_ref):
    xm = jnp.mean(x_ref[...].astype(jnp.float32), axis=-1)       # [tile_b, C]
    out_ref[...] = (
        jnp.dot(xm, w_ref[...].astype(jnp.float32),
                preferred_element_type=jnp.float32)
        + b_ref[...].astype(jnp.float32)
    )


def _gap_linear(x3d, w, b):
    """x3d: [B, C, HW], w: [C, Npad] f32, b: [1, Npad] f32 -> [B, Npad] f32."""
    B, C, HW = x3d.shape
    Npad = w.shape[1]

    padded_b = _round_up(B, 8)                       # sublane pad only (<= 7 rows)
    if padded_b != B:
        x3d = jnp.pad(x3d, ((0, padded_b - B), (0, 0), (0, 0)))
    tile_b = _choose_tile_b(padded_b, C * HW, jnp.dtype(x3d.dtype).itemsize)

    out = pl.pallas_call(
        _gap_linear_kernel,
        out_shape=jax.ShapeDtypeStruct((padded_b, Npad), jnp.float32),
        grid_spec=pltpu.PrefetchScalarGridSpec(
            num_scalar_prefetch=0,
            grid=(padded_b // tile_b,),
            in_specs=[
                pl.BlockSpec((tile_b, C, HW), lambda i: (i, 0, 0)),
                pl.BlockSpec((C, Npad), lambda i: (0, 0)),
                pl.BlockSpec((1, Npad), lambda i: (0, 0)),
            ],
            out_specs=pl.BlockSpec((tile_b, Npad), lambda i: (i, 0)),
        ),
        compiler_params=pltpu.CompilerParams(
            dimension_semantics=("parallel",),
        ),
    )(x3d, w, b)
    return out[:B]


# ----------------------------------------------------------------------------
# Hoisted weight prep: fold trigger FC + lane-pad once per set of params.
# ----------------------------------------------------------------------------
def prepare_watermark_params(params, trigger=False):
    if trigger:
        w_eff = params["w_base"] @ params["w_fc"]                    # [C, WM]
        b_eff = params["b_base"] @ params["w_fc"] + params["b_fc"]   # [1, WM]
    else:
        w_eff = params["w_base"]                                     # [C, 10]
        b_eff = params["b_base"]                                     # [1, 10]
    out_dim = w_eff.shape[1]
    out_pad = _round_up(out_dim, 128)                # lane-dense output slab
    if out_pad != out_dim:
        w_eff = jnp.pad(w_eff, ((0, 0), (0, out_pad - out_dim)))
        b_eff = jnp.pad(b_eff, ((0, 0), (0, out_pad - out_dim)))
    return w_eff.astype(jnp.float32), b_eff.astype(jnp.float32), out_dim


# ----------------------------------------------------------------------------
# WatermarkModule.forward equivalent (trigger is a static Python bool).
# ----------------------------------------------------------------------------
def watermark_module_forward(x_nchw, params, trigger=False, prepared=None):
    """x_nchw: [B, C, H, W] (PyTorch NCHW layout), f32 or bf16."""
    B, C, H, W = x_nchw.shape
    if prepared is None:
        prepared = prepare_watermark_params(params, trigger)
    w_eff, b_eff, out_dim = prepared
    x3d = x_nchw.reshape(B, C, H * W)
    out = _gap_linear(x3d, w_eff, b_eff)
    return out[:, :out_dim]


def init_params(key, in_channels, watermark_size=128):
    """Deterministic init mirroring nn.Linear default (uniform +/- 1/sqrt(fan_in))."""
    k1, k2, k3, k4 = jax.random.split(key, 4)
    bound_base = 1.0 / jnp.sqrt(float(in_channels))
    bound_fc = 1.0 / jnp.sqrt(10.0)
    return {
        "w_base": jax.random.uniform(k1, (in_channels, 10), jnp.float32,
                                     -bound_base, bound_base),
        "b_base": jax.random.uniform(k2, (1, 10), jnp.float32,
                                     -bound_base, bound_base),
        "w_fc": jax.random.uniform(k3, (10, watermark_size), jnp.float32,
                                   -bound_fc, bound_fc),
        "b_fc": jax.random.uniform(k4, (1, watermark_size), jnp.float32,
                                   -bound_fc, bound_fc),
    }


if __name__ == "__main__":
    key = jax.random.PRNGKey(0)
    kx, kp = jax.random.split(key)

    B, C, H, W = 2, 4, 16, 16
    WM = 128
    x = jax.random.normal(kx, (B, C, H, W), jnp.float32)
    params = init_params(kp, in_channels=C, watermark_size=WM)

    # Weight prep hoisted out of the per-call forward (once per params).
    prep_base = prepare_watermark_params(params, trigger=False)
    prep_wm = prepare_watermark_params(params, trigger=True)

    # trigger=False path: returns base model logits [B, 10]
    base_out = watermark_module_forward(x, params, trigger=False, prepared=prep_base)
    base_out = jax.block_until_ready(base_out)
    assert base_out.shape == (B, 10)

    # trigger=True path: returns watermark vector [B, watermark_size]
    wm_out = watermark_module_forward(x, params, trigger=True, prepared=prep_wm)
    wm_out = jax.block_until_ready(wm_out)
    assert wm_out.shape == (B, WM)

    # Reference check in plain JAX (GAP -> Linear -> optional FC)
    gap = jnp.mean(x.reshape(B, C, H * W), axis=-1)
    ref_base = gap @ params["w_base"] + params["b_base"]
    ref_wm = ref_base @ params["w_fc"] + params["b_fc"]
    assert jnp.allclose(base_out, ref_base, atol=2e-5), \
        float(jnp.max(jnp.abs(base_out - ref_base)))
    assert jnp.allclose(wm_out, ref_wm, atol=2e-5), \
        float(jnp.max(jnp.abs(wm_out - ref_wm)))

    print("KERNEL_OK")
</pallas_src>

<mosaic_0001>
module attributes {stable_mosaic.version = 11 : i64} {
  func.func @_gap_linear_kernel(%arg0: i32, %arg1: memref<8x4x256xf32, #tpu.memory_space<vmem>>, %arg2: memref<4x128xf32, #tpu.memory_space<vmem>>, %arg3: memref<1x128xf32, #tpu.memory_space<vmem>>, %arg4: memref<8x128xf32, #tpu.memory_space<vmem>>) attributes {dimension_semantics = [#tpu.dimension_semantics<parallel>], iteration_bounds = array<i64: 1>, scalar_prefetch = 0 : i64, scratch_operands = 0 : i64, tpu.core_type = #tpu.core_type<tc>, window_params = [{transform_indices = @transform_0, window_bounds = array<i64: 8, 4, 256>}, {pipeline_mode = #tpu.pipeline_mode<synchronous>, transform_indices = @transform_1, window_bounds = array<i64: 4, 128>}, {pipeline_mode = #tpu.pipeline_mode<synchronous>, transform_indices = @transform_2, window_bounds = array<i64: 1, 128>}, {transform_indices = @transform_3, window_bounds = array<i64: 8, 128>}]} {
    %c0 = arith.constant 0 : index
    %c0_0 = arith.constant 0 : index
    %c0_1 = arith.constant 0 : index
    %0 = vector.load %arg1[%c0, %c0_0, %c0_1] : memref<8x4x256xf32, #tpu.memory_space<vmem>>, vector<8x4x256xf32>
    %cst = arith.constant dense<0.000000e+00> : vector<8x4xf32>
    %1 = vector.multi_reduction <add>, %0, %cst [2] : vector<8x4x256xf32> to vector<8x4xf32>
    %cst_2 = arith.constant 2.560000e+02 : f32
    %2 = vector.broadcast %cst_2 : f32 to vector<8x4xf32>
    %3 = arith.divf %1, %2 : vector<8x4xf32>
    %c0_3 = arith.constant 0 : index
    %c0_4 = arith.constant 0 : index
    %4 = vector.load %arg2[%c0_3, %c0_4] : memref<4x128xf32, #tpu.memory_space<vmem>>, vector<4x128xf32>
    %cst_5 = arith.constant dense<0.000000e+00> : vector<8x128xf32>
    %5 = tpu.matmul %3, %4, %cst_5 {dimension_numbers = #tpu.dot_dimension_numbers<[1], [0], [0], [1], [0, 0, 1, 1], [], []>} : vector<8x4xf32>, vector<4x128xf32>, vector<8x128xf32> -> vector<8x128xf32>
    %c0_6 = arith.constant 0 : index
    %c0_7 = arith.constant 0 : index
    %6 = vector.load %arg3[%c0_6, %c0_7] : memref<1x128xf32, #tpu.memory_space<vmem>>, vector<1x128xf32>
    %7 = vector.broadcast %6 : vector<1x128xf32> to vector<8x128xf32>
    %8 = arith.addf %5, %7 : vector<8x128xf32>
    %c0_8 = arith.constant 0 : index
    %c0_9 = arith.constant 0 : index
    %9 = vector.load %arg4[%c0_8, %c0_9] : memref<8x128xf32, #tpu.memory_space<vmem>>, vector<8x128xf32>
    tpu.vector_store %arg4[%c0_8, %c0_9], %8 {strides = array<i32>} : memref<8x128xf32, #tpu.memory_space<vmem>>, vector<8x128xf32>,
    return
  }
  func.func @transform_0(%arg0: i32) -> (i32, i32, i32) {
    %c0_i32 = arith.constant 0 : i32
    %c0_i32_0 = arith.constant 0 : i32
    %c0_i32_1 = arith.constant 0 : i32
    return %arg0, %c0_i32, %c0_i32_0 : i32, i32, i32
  }
  func.func @transform_1(%arg0: i32) -> (i32, i32) {
    %c0_i32 = arith.constant 0 : i32
    %c0_i32_0 = arith.constant 0 : i32
    %c0_i32_1 = arith.constant 0 : i32
    return %c0_i32, %c0_i32_0 : i32, i32
  }
  func.func @transform_2(%arg0: i32) -> (i32, i32) {
    %c0_i32 = arith.constant 0 : i32
    %c0_i32_0 = arith.constant 0 : i32
    %c0_i32_1 = arith.constant 0 : i32
    return %c0_i32, %c0_i32_0 : i32, i32
  }
  func.func @transform_3(%arg0: i32) -> (i32, i32) {
    %c0_i32 = arith.constant 0 : i32
    %c0_i32_0 = arith.constant 0 : i32
    return %arg0, %c0_i32 : i32, i32
  }
}

</mosaic_0001>

<llo_original>
// kernel: tpu_custom_call.1
$region0: #{tpu_custom_call.1}
  #allocation0 [shape = 'u32[]', space=smem, size = 0x4, offset = 0x4, fixed_abs, tag = 'smem constant byte address 0x4 - core index']
  #allocation1 [shape = 'u32[144,128]{1,0:T(1,128)}', space=vmem, size = 0x12000, scoped, tag = 'internal scratch']
  %s0 = inlined_call_operand.hbm [shape: f32[8,4,256], index: 0, kind: input, shape index: {}]
  %s1 = inlined_call_operand.hbm [shape: f32[4,128], index: 1, kind: input, shape index: {}]
  %s2 = inlined_call_operand.vmem [shape: f32[1,128], index: 2, kind: input, shape index: {}]
  %s3 = inlined_call_operand.hbm [shape: f32[8,128], index: 3, kind: output, shape index: {}]
  %s4 = sld [smem:[#allocation0]]
  $region30: #{tpu_custom_call.1} parent=0
    _
  %s6 = ssub.s32 1, %s4
  %s7 = scalar_select 0, %s6, %s4
  $region1: #{tpu_custom_call.1} parent=0
    #allocation2 [shape = 'u8[32768]{0}', space=vmem, size = 0x8000, scoped, tag = 'input window, operand 0, single buffered']
    #allocation3 [shape = 's32[1]{0}', space=sflag, size = 0x4, scoped, tag = 'scoped memory for tpu_custom_call.1']
    #allocation4 [shape = 's32[1]{0}', space=sflag, size = 0x4, scoped, tag = 'scoped memory for tpu_custom_call.1']
    #allocation5 [shape = 'u8[2048]{0}', space=vmem, size = 0x800, scoped, tag = 'input window, operand 1, single buffered']
    #allocation6 [shape = 's32[1]{0}', space=sflag, size = 0x4, scoped, tag = 'scoped memory for tpu_custom_call.1']
    #allocation7 [shape = 'u8[4096]{0}', space=vmem, size = 0x1000, scoped, tag = 'output window, operand 0, single buffered']
    %8 = vsyncpa [#allocation3], 0
    %9 = vsyncpa [#allocation6], 0
    %10 = vsyncpa [#allocation4], 0
    // Predicated region
    $region2: #{tpu_custom_call.1} parent=1 // pred_check
      _
    $region3: #{tpu_custom_call.1} parent=1 // pred_check_branch
      %12 = sbr.rel (0) target = $region5
    $region4: #{tpu_custom_call.1} parent=1 // pred_region
      %s14 = ssub.s32 1024, 1024
      %15 = vsyncadd [#allocation3], %s14
      %s16 = sshll.u32 [#allocation2], 4
      %s17 = int_to_ptr.vmem [resolvable:$true] %s16
      %22 = dma.hbm_to_vmem [thread:$0]  %s0, 1024, %s17, [#allocation3], 128, 128, 8
    $region5: #{tpu_custom_call.1} parent=1 // pred_fallthru
      _
    // Predicated region
    $region6: #{tpu_custom_call.1} parent=1 // pred_check
      _
    $region7: #{tpu_custom_call.1} parent=1 // pred_check_branch
      %24 = sbr.rel (0) target = $region9
    $region8: #{tpu_custom_call.1} parent=1 // pred_region
      %s26 = ssub.s32 64, 64
      %27 = vsyncadd [#allocation6], %s26
      %s29 = sshll.u32 [#allocation5], 4
      %s30 = int_to_ptr.vmem [resolvable:$true] %s29
      %32 = dma.hbm_to_vmem [thread:$0]  %s1, 64, %s30, [#allocation6]
    $region9: #{tpu_custom_call.1} parent=1 // pred_fallthru
      _
    // Predicated region
    $region10: #{tpu_custom_call.1} parent=1 // pred_check
      _
    $region11: #{tpu_custom_call.1} parent=1 // pred_check_branch
      %34 = sbr.rel (0) target = $region13
    $region12: #{tpu_custom_call.1} parent=1 // pred_region
      _
    $region13: #{tpu_custom_call.1} parent=1 // pred_fallthru
      _
    // Predicated region
    $region14: #{tpu_custom_call.1} parent=1 // pred_check
      _
    $region15: #{tpu_custom_call.1} parent=1 // pred_check_branch
      %36 = sbr.rel (0) target = $region17
    $region16: #{tpu_custom_call.1} parent=1 // pred_region
      %37 = dma.done [#allocation3], 1024
    $region17: #{tpu_custom_call.1} parent=1 // pred_fallthru
      _
    // Predicated region
    $region18: #{tpu_custom_call.1} parent=1 // pred_check
      _
    $region19: #{tpu_custom_call.1} parent=1 // pred_check_branch
      %39 = sbr.rel (0) target = $region21
    $region20: #{tpu_custom_call.1} parent=1 // pred_region
      %40 = dma.done [#allocation6], 64
    $region21: #{tpu_custom_call.1} parent=1 // pred_fallthru
      _
    %v41 = vld [vmem:[#allocation2] sm:$0xff]
    %v42 = vld [vmem:[#allocation2 + $0x8] sm:$0xff]
    %v43 = vld [vmem:[#allocation2 + $0x10] sm:$0xff]
    %v44 = vld [vmem:[#allocation2 + $0x18] sm:$0xff]
    %v45 = vld [vmem:[#allocation2 + $0x20] sm:$0xff]
    %v46 = vld [vmem:[#allocation2 + $0x28] sm:$0xff]
    %v47 = vld [vmem:[#allocation2 + $0x30] sm:$0xff]
    %v48 = vld [vmem:[#allocation2 + $0x38] sm:$0xff]
    %v57 = vcombine.high %v41, %v41
    %v58 = vcombine.high %v42, %v42
    %v59 = vcombine.high %v43, %v43
    %v60 = vcombine.high %v44, %v44
    %v61 = vcombine.high %v45, %v45
    %v62 = vcombine.high %v46, %v46
    %v63 = vcombine.high %v47, %v47
    %v64 = vcombine.high %v48, %v48
    %vm73 = vcmask 1043456
    %v74 = vsel %vm73, %v41, 0.0
    %v75 = vsel %vm73, %v57, 0.0
    %v76 = vadd.f32 %v74, %v75
    %77 = vadd.xlane.f32.xlu0 %v76
    %v78 = vpop.xlane.xlu0 %77
    %v79 = vsel %vm73, %v42, 0.0
    %v80 = vsel %vm73, %v58, 0.0
    %v81 = vadd.f32 %v79, %v80
    %82 = vadd.xlane.f32.xlu0 %v81
    %v83 = vpop.xlane.xlu0 %82
    %v84 = vsel %vm73, %v43, 0.0
    %v85 = vsel %vm73, %v59, 0.0
    %v86 = vadd.f32 %v84, %v85
    %87 = vadd.xlane.f32.xlu0 %v86
    %v88 = vpop.xlane.xlu0 %87
    %v89 = vsel %vm73, %v44, 0.0
    %v90 = vsel %vm73, %v60, 0.0
    %v91 = vadd.f32 %v89, %v90
    %92 = vadd.xlane.f32.xlu0 %v91
    %v93 = vpop.xlane.xlu0 %92
    %v94 = vsel %vm73, %v45, 0.0
    %v95 = vsel %vm73, %v61, 0.0
    %v96 = vadd.f32 %v94, %v95
    %97 = vadd.xlane.f32.xlu0 %v96
    %v98 = vpop.xlane.xlu0 %97
    %v99 = vsel %vm73, %v46, 0.0
    %v100 = vsel %vm73, %v62, 0.0
    %v101 = vadd.f32 %v99, %v100
    %102 = vadd.xlane.f32.xlu0 %v101
    %v103 = vpop.xlane.xlu0 %102
    %v104 = vsel %vm73, %v47, 0.0
    %v105 = vsel %vm73, %v63, 0.0
    %v106 = vadd.f32 %v104, %v105
    %107 = vadd.xlane.f32.xlu0 %v106
    %v108 = vpop.xlane.xlu0 %107
    %v109 = vsel %vm73, %v48, 0.0
    %v110 = vsel %vm73, %v64, 0.0
    %v111 = vadd.f32 %v109, %v110
    %112 = vadd.xlane.f32.xlu0 %v111
    %v113 = vpop.xlane.xlu0 %112
    %v114 = vrcp.pop 256.0
    %v115 = vmul.f32 %v78, %v114
    %v116 = vmul.f32 %v83, %v114
    %v117 = vmul.f32 %v88, %v114
    %v118 = vmul.f32 %v93, %v114
    %v119 = vmul.f32 %v98, %v114
    %v120 = vmul.f32 %v103, %v114
    %v121 = vmul.f32 %v108, %v114
    %v122 = vmul.f32 %v113, %v114
    %v123 = vld [vmem:[#allocation5] sm:$0xf]
    %v124 = vld [vmem:[%s2] sm:$0x1]
    %v126 = vlaneseq
    %v127 = vshrl.u32 %v126, 7
    %v128 = vsub.s32 0, %v127
    %v129 = vrot.slane %v124, %v128
    %v139 = vlaneseq
    %v140 = vand.u32 %v139, 127
    %v141 = vlaneseq
    %v142 = vshrl.u32 %v141, 7
    %v143 = vsub.s32 %v140, %v142
    %v144 = vrot.slane %v115, %v143
    %v145 = vlaneseq
    %v146 = vshrl.u32 %v145, 7
    %v147 = vsub.s32 %v140, %v146
    %v148 = vrot.slane %v116, %v147
    %v149 = vlaneseq
    %v150 = vshrl.u32 %v149, 7
    %v151 = vsub.s32 %v140, %v150
    %v152 = vrot.slane %v117, %v151
    %v153 = vlaneseq
    %v154 = vshrl.u32 %v153, 7
    %v155 = vsub.s32 %v140, %v154
    %v156 = vrot.slane %v118, %v155
    %v157 = vlaneseq
    %v158 = vshrl.u32 %v157, 7
    %v159 = vsub.s32 %v140, %v158
    %v160 = vrot.slane %v119, %v159
    %v161 = vlaneseq
    %v162 = vshrl.u32 %v161, 7
    %v163 = vsub.s32 %v140, %v162
    %v164 = vrot.slane %v120, %v163
    %v165 = vlaneseq
    %v166 = vshrl.u32 %v165, 7
    %v167 = vsub.s32 %v140, %v166
    %v168 = vrot.slane %v121, %v167
    %v169 = vlaneseq
    %v170 = vshrl.u32 %v169, 7
    %v171 = vsub.s32 %v140, %v170
    %v172 = vrot.slane %v122, %v171
    %vm173 = vcmask 1041409
    %v174 = vsel %vm173, %v148, %v144
    %vm175 = vcmask 1042434
    %v176 = vsel %vm175, %v152, %v174
    %vm177 = vcmask 1043459
    %v178 = vsel %vm177, %v156, %v176
    %vm179 = vcmask 1044484
    %v180 = vsel %vm179, %v160, %v178
    %vm181 = vcmask 1045509
    %v182 = vsel %vm181, %v164, %v180
    %vm183 = vcmask 1046534
    %v184 = vsel %vm183, %v168, %v182
    %vm185 = vcmask 1047559
    %v186 = vsel %vm185, %v172, %v184
    %vm187 = vcmask 31744
    %v188 = vsel %vm187, %v186, 0
    %v191 = vsel %vm73, %v123, 0
    %193 = vmatprep.subr.mxu0 0.0
    %194 = vmatpush1.msra.mxu0 %v191
    %195 = vmatprep.subr.mxu0 0.0
    %196 = vmatpush1.msra.mxu0 0.0
    %197 = vmatprep.subr.mxu0 0.0
    %198 = vmatpush1.msra.mxu0 0.0
    %199 = vmatprep.subr.mxu0 0.0
    %200 = vmatpush1.msra.mxu0 0.0
    %201 = vmatprep.subr.mxu0 0.0
    %202 = vmatpush1.msra.mxu0 0.0
    %203 = vmatprep.subr.mxu0 0.0
    %204 = vmatpush1.msra.mxu0 0.0
    %205 = vmatprep.subr.mxu0 0.0
    %206 = vmatpush1.msra.mxu0 0.0
    %207 = vmatprep.subr.mxu0 0.0
    %208 = vmatpush1.msra.mxu0 0.0
    %209 = vmatprep.subr.mxu0 0.0
    %210 = vmatpush1.msra.mxu0 0.0
    %211 = vmatprep.subr.mxu0 0.0
    %212 = vmatpush1.msra.mxu0 0.0
    %213 = vmatprep.subr.mxu0 0.0
    %214 = vmatpush1.msra.mxu0 0.0
    %215 = vmatprep.subr.mxu0 0.0
    %216 = vmatpush1.msra.mxu0 0.0
    %217 = vmatprep.subr.mxu0 0.0
    %218 = vmatpush1.msra.mxu0 0.0
    %219 = vmatprep.subr.mxu0 0.0
    %220 = vmatpush1.msra.mxu0 0.0
    %221 = vmatprep.subr.mxu0 0.0
    %222 = vmatpush1.msra.mxu0 0.0
    %223 = vmatprep.subr.mxu0 0.0
    %224 = vmatpush1.msra.mxu0 0.0
    %225 = vmatprep.subr.mxu0 0.0
    %226 = vmatpush1.msra.mxu0 0.0
    %227 = vmatprep.subr.mxu0 0.0
    %228 = vmatpush1.msra.mxu0 0.0
    %229 = vmatprep.subr.mxu0 0.0
    %230 = vmatpush1.msra.mxu0 0.0
    %231 = vmatprep.subr.mxu0 0.0
    %232 = vmatpush1.msra.mxu0 0.0
    %233 = vmatprep.subr.mxu0 0.0
    %234 = vmatpush1.msra.mxu0 0.0
    %235 = vmatprep.subr.mxu0 0.0
    %236 = vmatpush1.msra.mxu0 0.0
    %237 = vmatprep.subr.mxu0 0.0
    %238 = vmatpush1.msra.mxu0 0.0
    %239 = vmatprep.subr.mxu0 0.0
    %240 = vmatpush1.msra.mxu0 0.0
    %241 = vmatprep.subr.mxu0 0.0
    %242 = vmatpush1.msra.mxu0 0.0
    %243 = vmatprep.subr.mxu0 0.0
    %244 = vmatpush1.msra.mxu0 0.0
    %245 = vmatprep.subr.mxu0 0.0
    %246 = vmatpush1.msra.mxu0 0.0
    %247 = vmatprep.subr.mxu0 0.0
    %248 = vmatpush1.msra.mxu0 0.0
    %249 = vmatprep.subr.mxu0 0.0
    %250 = vmatpush1.msra.mxu0 0.0
    %251 = vmatprep.subr.mxu0 0.0
    %252 = vmatpush1.msra.mxu0 0.0
    %253 = vmatprep.subr.mxu0 0.0
    %254 = vmatpush1.msra.mxu0 0.0
    %255 = vmatprep.subr.mxu0 0.0
    %256 = vmatpush1.msra.mxu0 0.0
    %257 = vmatprep.mubr.f32.mxu0 0.0
    %258 = vmatmul.mubr.f32.gmra.mrb[0].mxu0 %v188
    %v259 = vpop.f32.mrb[0].mxu0
    %v260 = vadd.f32 %v129, %v259
    %v261 = vpop.f32.mrb[0].mxu0
    %262 = vdwg.mxu0
    %263 = vst [vmem:[#allocation7] sm:$0xff] %v260
    // Predicated region
    $region22: #{tpu_custom_call.1} parent=1 // pred_check
      _
    $region23: #{tpu_custom_call.1} parent=1 // pred_check_branch
      %265 = sbr.rel (0) target = $region25
    $region24: #{tpu_custom_call.1} parent=1 // pred_region
      %s267 = ssub.s32 128, 128
      %268 = vsyncadd [#allocation4], %s267
      %s270 = sshll.u32 [#allocation7], 4
      %s271 = int_to_ptr.vmem [resolvable:$true] %s270
      %273 = dma.vmem_to_hbm [thread:$0]  %s271, 128, %s3, [#allocation4]
    $region25: #{tpu_custom_call.1} parent=1 // pred_fallthru
      _
    // Predicated region
    $region26: #{tpu_custom_call.1} parent=1 // pred_check
      _
    $region27: #{tpu_custom_call.1} parent=1 // pred_check_branch
      %275 = sbr.rel (0) target = $region29
    $region28: #{tpu_custom_call.1} parent=1 // pred_region
      %276 = dma.done [#allocation4], 128
    $region29: #{tpu_custom_call.1} parent=1 // pred_fallthru
      _
    %277 = vsyncpa [#allocation3], 1
    %278 = vsyncpa [#allocation6], 1
    %279 = vsyncpa [#allocation4], 1

</llo_original>
